<compile_context>
chip_gen: v5e
topology: v5e:2x2
jax: 0.10.0
libtpu: 0.0.40
codegen_flags: <defaults>
</compile_context>

<pallas_src>
import functools

import jax
import jax.numpy as jnp
from jax.experimental import pallas as pl
from jax.experimental.pallas import tpu as pltpu


_LANES = 128
_MAX_ROW_TILE = 1024  # lane-rows per grid step -> 131072 batch elements / step


def _sigmoid(z):
    # sigmoid(z) == 0.5 * (tanh(z / 2) + 1): a single EUP transcendental.
    return 0.5 * (jnp.tanh(0.5 * z) + 1.0)


def _mlp_kernel(x_ref, w1_ref, b1_ref, w2_ref, b2_ref, o_ref, *, final_sigmoid):
    """Batch-in-lanes MLP.

    x_ref : (in_size, rb, 128) f32 VMEM   -- batch along (sublane, lane)
    w1/b1/w2/b2 : SMEM scalars (PyTorch nn.Linear (out, in) layout)
    o_ref : (out_size, rb, 128)           -- lane-dense output slab
    """
    H1, in_size = w1_ref.shape
    out_size = w2_ref.shape[0]

    # Each input feature is a dense (rb, 128) slab.
    feats = [x_ref[f] for f in range(in_size)]

    # Layer 1 + sigmoid: per hidden unit, in_size scalar*vector FMAs on the VPU.
    hs = []
    for h in range(H1):
        z = feats[0] * w1_ref[h, 0]
        for f in range(1, in_size):
            z = z + feats[f] * w1_ref[h, f]
        hs.append(_sigmoid(z + b1_ref[h]))

    # Layer 2 (+ optional sigmoid / fused >=0.5 threshold).
    for o in range(out_size):
        z2 = hs[0] * w2_ref[o, 0]
        for h in range(1, H1):
            z2 = z2 + hs[h] * w2_ref[o, h]
        z2 = z2 + b2_ref[o]
        if final_sigmoid:
            o_ref[o] = _sigmoid(z2).astype(o_ref.dtype)
        else:
            # sigmoid(z) >= 0.5  <=>  z >= 0  -> skip the final sigmoid.
            o_ref[o] = (z2 >= 0.0).astype(o_ref.dtype)


def _pick_row_tile(R):
    """Row tile (second-to-last block dim). Multiple of 32 keeps the block
    legal for f32 *and* int8 tiling; >=2 grid steps once R is large enough so
    the parallel batch axis can use both v7x TensorCores."""
    if R <= 32:
        return R  # single full-extent tile (full dims are always legal)
    rb = min(_MAX_ROW_TILE, -(-R // 2))
    return -(-rb // 32) * 32


def _run(x, w1, b1, w2, b2, *, final_sigmoid, out_dtype):
    B, in_size = x.shape
    H1 = w1.shape[0]
    out_size = w2.shape[0]

    x = x.astype(jnp.float32)
    w1 = w1.astype(jnp.float32)
    b1 = b1.reshape(-1).astype(jnp.float32)
    w2 = w2.astype(jnp.float32)
    b2 = b2.reshape(-1).astype(jnp.float32)

    # ---- batch-in-lanes layout: (B, in) -> (in, R, 128) -------------------
    B_pad = -(-B // _LANES) * _LANES
    R = B_pad // _LANES
    x_t = jnp.transpose(x)                       # (in, B): one cheap XLA pass
    if B_pad != B:
        x_t = jnp.pad(x_t, ((0, 0), (0, B_pad - B)))
    x_t = x_t.reshape(in_size, R, _LANES)        # free reshape (contiguous)

    rb = _pick_row_tile(R)
    grid = (pl.cdiv(R, rb),)

    kernel = functools.partial(_mlp_kernel, final_sigmoid=final_sigmoid)

    y = pl.pallas_call(
        kernel,
        out_shape=jax.ShapeDtypeStruct((out_size, R, _LANES), out_dtype),
        grid=grid,
        in_specs=[
            pl.BlockSpec((in_size, rb, _LANES), lambda i: (0, i, 0)),   # x
            pl.BlockSpec(memory_space=pltpu.MemorySpace.SMEM),          # w1
            pl.BlockSpec(memory_space=pltpu.MemorySpace.SMEM),          # b1
            pl.BlockSpec(memory_space=pltpu.MemorySpace.SMEM),          # w2
            pl.BlockSpec(memory_space=pltpu.MemorySpace.SMEM),          # b2
        ],
        out_specs=pl.BlockSpec((out_size, rb, _LANES), lambda i: (0, i, 0)),
        compiler_params=pltpu.CompilerParams(
            dimension_semantics=("parallel",),   # batch tiles shard across TCs
        ),
    )(x_t, w1, b1, w2, b2)

    # (out, R, 128) -> (out, B_pad) -> (B, out).  For out_size == 1 this is a
    # free reshape plus a prefix slice that trims the lane padding.
    y = y.reshape(out_size, B_pad)[:, :B]
    return jnp.transpose(y)


def mlp_forward(x, w1, b1, w2, b2):
    """sigmoid(L2(sigmoid(L1(x)))) with PyTorch nn.Linear (out, in) weights."""
    return _run(x, w1, b1, w2, b2, final_sigmoid=True, out_dtype=jnp.float32)


def predict(x, w1, b1, w2, b2):
    """Matches Model.predict: forward(x) >= 0.5, threshold fused in-kernel."""
    # TODO(synk): emit bool (i1) directly once i1 VMEM stores are portable
    # across Mosaic versions; int8 0/1 + astype(bool) is the cheap stand-in.
    y = _run(x, w1, b1, w2, b2, final_sigmoid=False, out_dtype=jnp.int8)
    return y.astype(jnp.bool_)


def _ref_forward(x, w1, b1, w2, b2):
    h = jax.nn.sigmoid(x @ w1.T + b1)
    return jax.nn.sigmoid(h @ w2.T + b2)


if __name__ == "__main__":
    # XOR problem shapes: input_size=2, H1=4, output_size=1; small batch.
    input_size, H1, output_size = 2, 4, 1
    batch = 8

    key = jax.random.PRNGKey(0)
    k_x, k_w1, k_b1, k_w2, k_b2, k_x2 = jax.random.split(key, 6)

    x = jax.random.normal(k_x, (batch, input_size), dtype=jnp.float32)
    bnd1 = 1.0 / (input_size ** 0.5)
    bnd2 = 1.0 / (H1 ** 0.5)
    w1 = jax.random.uniform(k_w1, (H1, input_size), jnp.float32, -bnd1, bnd1)
    b1 = jax.random.uniform(k_b1, (H1,), jnp.float32, -bnd1, bnd1)
    w2 = jax.random.uniform(k_w2, (output_size, H1), jnp.float32, -bnd2, bnd2)
    b2 = jax.random.uniform(k_b2, (output_size,), jnp.float32, -bnd2, bnd2)

    out = mlp_forward(x, w1, b1, w2, b2)
    jax.block_until_ready(out)
    ref = _ref_forward(x, w1, b1, w2, b2)
    assert out.shape == (batch, output_size)
    assert jnp.allclose(out, ref, atol=1e-5), "forward mismatch vs pure-JAX reference"

    preds = predict(x, w1, b1, w2, b2)
    jax.block_until_ready(preds)
    assert preds.dtype == jnp.bool_
    assert bool(jnp.all(preds == (ref >= 0.5))), "predict mismatch vs pure-JAX reference"

    # Non-multiple-of-128 batch exercises the pad / prefix-slice path.
    x2 = jax.random.normal(k_x2, (300, input_size), dtype=jnp.float32)
    out2 = mlp_forward(x2, w1, b1, w2, b2)
    jax.block_until_ready(out2)
    ref2 = _ref_forward(x2, w1, b1, w2, b2)
    assert out2.shape == (300, output_size)
    assert jnp.allclose(out2, ref2, atol=1e-5), "padded-batch forward mismatch"

    print("KERNEL_OK")
</pallas_src>

<mosaic_0001>
module attributes {stable_mosaic.version = 11 : i64} {
  func.func @_mlp_kernel(%arg0: i32, %arg1: memref<2x1x128xf32, #tpu.memory_space<vmem>>, %arg2: memref<4x2xf32, #tpu.memory_space<smem>>, %arg3: memref<4xf32, #tpu.memory_space<smem>>, %arg4: memref<1x4xf32, #tpu.memory_space<smem>>, %arg5: memref<1xf32, #tpu.memory_space<smem>>, %arg6: memref<1x1x128xf32, #tpu.memory_space<vmem>>) attributes {dimension_semantics = [#tpu.dimension_semantics<parallel>], iteration_bounds = array<i64: 1>, scalar_prefetch = 0 : i64, scratch_operands = 0 : i64, tpu.core_type = #tpu.core_type<tc>, window_params = [{transform_indices = @transform_0, window_bounds = array<i64: 2, 1, 128>}, {transform_indices = @transform_1, window_bounds = array<i64: 4, 2>}, {transform_indices = @transform_2, window_bounds = array<i64: 4>}, {transform_indices = @transform_3, window_bounds = array<i64: 1, 4>}, {transform_indices = @transform_4, window_bounds = array<i64: 1>}, {transform_indices = @transform_5, window_bounds = array<i64: 1, 1, 128>}]} {
    %c0 = arith.constant 0 : index
    %c0_0 = arith.constant 0 : index
    %c0_1 = arith.constant 0 : index
    %0 = vector.load %arg1[%c0, %c0_0, %c0_1] : memref<2x1x128xf32, #tpu.memory_space<vmem>>, vector<1x1x128xf32>
    %1 = vector.shape_cast %0 : vector<1x1x128xf32> to vector<1x128xf32>
    %c1 = arith.constant 1 : index
    %c0_2 = arith.constant 0 : index
    %c0_3 = arith.constant 0 : index
    %2 = vector.load %arg1[%c1, %c0_2, %c0_3] : memref<2x1x128xf32, #tpu.memory_space<vmem>>, vector<1x1x128xf32>
    %3 = vector.shape_cast %2 : vector<1x1x128xf32> to vector<1x128xf32>
    %c0_4 = arith.constant 0 : index
    %c0_5 = arith.constant 0 : index
    %4 = memref.load %arg2[%c0_4, %c0_5] : memref<4x2xf32, #tpu.memory_space<smem>>
    %5 = vector.broadcast %4 : f32 to vector<1x128xf32>
    %6 = arith.mulf %1, %5 : vector<1x128xf32>
    %c0_6 = arith.constant 0 : index
    %c1_7 = arith.constant 1 : index
    %7 = memref.load %arg2[%c0_6, %c1_7] : memref<4x2xf32, #tpu.memory_space<smem>>
    %8 = vector.broadcast %7 : f32 to vector<1x128xf32>
    %9 = arith.mulf %3, %8 : vector<1x128xf32>
    %10 = arith.addf %6, %9 : vector<1x128xf32>
    %c0_8 = arith.constant 0 : index
    %11 = memref.load %arg3[%c0_8] : memref<4xf32, #tpu.memory_space<smem>>
    %12 = vector.broadcast %11 : f32 to vector<1x128xf32>
    %13 = arith.addf %10, %12 : vector<1x128xf32>
    %cst = arith.constant 5.000000e-01 : f32
    %14 = vector.broadcast %cst : f32 to vector<1x128xf32>
    %15 = arith.mulf %14, %13 : vector<1x128xf32>
    %16 = math.tanh %15 : vector<1x128xf32>
    %cst_9 = arith.constant 1.000000e+00 : f32
    %17 = vector.broadcast %cst_9 : f32 to vector<1x128xf32>
    %18 = arith.addf %16, %17 : vector<1x128xf32>
    %cst_10 = arith.constant 5.000000e-01 : f32
    %19 = vector.broadcast %cst_10 : f32 to vector<1x128xf32>
    %20 = arith.mulf %19, %18 : vector<1x128xf32>
    %c1_11 = arith.constant 1 : index
    %c0_12 = arith.constant 0 : index
    %21 = memref.load %arg2[%c1_11, %c0_12] : memref<4x2xf32, #tpu.memory_space<smem>>
    %22 = vector.broadcast %21 : f32 to vector<1x128xf32>
    %23 = arith.mulf %1, %22 : vector<1x128xf32>
    %c1_13 = arith.constant 1 : index
    %c1_14 = arith.constant 1 : index
    %24 = memref.load %arg2[%c1_13, %c1_14] : memref<4x2xf32, #tpu.memory_space<smem>>
    %25 = vector.broadcast %24 : f32 to vector<1x128xf32>
    %26 = arith.mulf %3, %25 : vector<1x128xf32>
    %27 = arith.addf %23, %26 : vector<1x128xf32>
    %c1_15 = arith.constant 1 : index
    %28 = memref.load %arg3[%c1_15] : memref<4xf32, #tpu.memory_space<smem>>
    %29 = vector.broadcast %28 : f32 to vector<1x128xf32>
    %30 = arith.addf %27, %29 : vector<1x128xf32>
    %cst_16 = arith.constant 5.000000e-01 : f32
    %31 = vector.broadcast %cst_16 : f32 to vector<1x128xf32>
    %32 = arith.mulf %31, %30 : vector<1x128xf32>
    %33 = math.tanh %32 : vector<1x128xf32>
    %cst_17 = arith.constant 1.000000e+00 : f32
    %34 = vector.broadcast %cst_17 : f32 to vector<1x128xf32>
    %35 = arith.addf %33, %34 : vector<1x128xf32>
    %cst_18 = arith.constant 5.000000e-01 : f32
    %36 = vector.broadcast %cst_18 : f32 to vector<1x128xf32>
    %37 = arith.mulf %36, %35 : vector<1x128xf32>
    %c2 = arith.constant 2 : index
    %c0_19 = arith.constant 0 : index
    %38 = memref.load %arg2[%c2, %c0_19] : memref<4x2xf32, #tpu.memory_space<smem>>
    %39 = vector.broadcast %38 : f32 to vector<1x128xf32>
    %40 = arith.mulf %1, %39 : vector<1x128xf32>
    %c2_20 = arith.constant 2 : index
    %c1_21 = arith.constant 1 : index
    %41 = memref.load %arg2[%c2_20, %c1_21] : memref<4x2xf32, #tpu.memory_space<smem>>
    %42 = vector.broadcast %41 : f32 to vector<1x128xf32>
    %43 = arith.mulf %3, %42 : vector<1x128xf32>
    %44 = arith.addf %40, %43 : vector<1x128xf32>
    %c2_22 = arith.constant 2 : index
    %45 = memref.load %arg3[%c2_22] : memref<4xf32, #tpu.memory_space<smem>>
    %46 = vector.broadcast %45 : f32 to vector<1x128xf32>
    %47 = arith.addf %44, %46 : vector<1x128xf32>
    %cst_23 = arith.constant 5.000000e-01 : f32
    %48 = vector.broadcast %cst_23 : f32 to vector<1x128xf32>
    %49 = arith.mulf %48, %47 : vector<1x128xf32>
    %50 = math.tanh %49 : vector<1x128xf32>
    %cst_24 = arith.constant 1.000000e+00 : f32
    %51 = vector.broadcast %cst_24 : f32 to vector<1x128xf32>
    %52 = arith.addf %50, %51 : vector<1x128xf32>
    %cst_25 = arith.constant 5.000000e-01 : f32
    %53 = vector.broadcast %cst_25 : f32 to vector<1x128xf32>
    %54 = arith.mulf %53, %52 : vector<1x128xf32>
    %c3 = arith.constant 3 : index
    %c0_26 = arith.constant 0 : index
    %55 = memref.load %arg2[%c3, %c0_26] : memref<4x2xf32, #tpu.memory_space<smem>>
    %56 = vector.broadcast %55 : f32 to vector<1x128xf32>
    %57 = arith.mulf %1, %56 : vector<1x128xf32>
    %c3_27 = arith.constant 3 : index
    %c1_28 = arith.constant 1 : index
    %58 = memref.load %arg2[%c3_27, %c1_28] : memref<4x2xf32, #tpu.memory_space<smem>>
    %59 = vector.broadcast %58 : f32 to vector<1x128xf32>
    %60 = arith.mulf %3, %59 : vector<1x128xf32>
    %61 = arith.addf %57, %60 : vector<1x128xf32>
    %c3_29 = arith.constant 3 : index
    %62 = memref.load %arg3[%c3_29] : memref<4xf32, #tpu.memory_space<smem>>
    %63 = vector.broadcast %62 : f32 to vector<1x128xf32>
    %64 = arith.addf %61, %63 : vector<1x128xf32>
    %cst_30 = arith.constant 5.000000e-01 : f32
    %65 = vector.broadcast %cst_30 : f32 to vector<1x128xf32>
    %66 = arith.mulf %65, %64 : vector<1x128xf32>
    %67 = math.tanh %66 : vector<1x128xf32>
    %cst_31 = arith.constant 1.000000e+00 : f32
    %68 = vector.broadcast %cst_31 : f32 to vector<1x128xf32>
    %69 = arith.addf %67, %68 : vector<1x128xf32>
    %cst_32 = arith.constant 5.000000e-01 : f32
    %70 = vector.broadcast %cst_32 : f32 to vector<1x128xf32>
    %71 = arith.mulf %70, %69 : vector<1x128xf32>
    %c0_33 = arith.constant 0 : index
    %c0_34 = arith.constant 0 : index
    %72 = memref.load %arg4[%c0_33, %c0_34] : memref<1x4xf32, #tpu.memory_space<smem>>
    %73 = vector.broadcast %72 : f32 to vector<1x128xf32>
    %74 = arith.mulf %20, %73 : vector<1x128xf32>
    %c0_35 = arith.constant 0 : index
    %c1_36 = arith.constant 1 : index
    %75 = memref.load %arg4[%c0_35, %c1_36] : memref<1x4xf32, #tpu.memory_space<smem>>
    %76 = vector.broadcast %75 : f32 to vector<1x128xf32>
    %77 = arith.mulf %37, %76 : vector<1x128xf32>
    %78 = arith.addf %74, %77 : vector<1x128xf32>
    %c0_37 = arith.constant 0 : index
    %c2_38 = arith.constant 2 : index
    %79 = memref.load %arg4[%c0_37, %c2_38] : memref<1x4xf32, #tpu.memory_space<smem>>
    %80 = vector.broadcast %79 : f32 to vector<1x128xf32>
    %81 = arith.mulf %54, %80 : vector<1x128xf32>
    %82 = arith.addf %78, %81 : vector<1x128xf32>
    %c0_39 = arith.constant 0 : index
    %c3_40 = arith.constant 3 : index
    %83 = memref.load %arg4[%c0_39, %c3_40] : memref<1x4xf32, #tpu.memory_space<smem>>
    %84 = vector.broadcast %83 : f32 to vector<1x128xf32>
    %85 = arith.mulf %71, %84 : vector<1x128xf32>
    %86 = arith.addf %82, %85 : vector<1x128xf32>
    %c0_41 = arith.constant 0 : index
    %87 = memref.load %arg5[%c0_41] : memref<1xf32, #tpu.memory_space<smem>>
    %88 = vector.broadcast %87 : f32 to vector<1x128xf32>
    %89 = arith.addf %86, %88 : vector<1x128xf32>
    %cst_42 = arith.constant 5.000000e-01 : f32
    %90 = vector.broadcast %cst_42 : f32 to vector<1x128xf32>
    %91 = arith.mulf %90, %89 : vector<1x128xf32>
    %92 = math.tanh %91 : vector<1x128xf32>
    %cst_43 = arith.constant 1.000000e+00 : f32
    %93 = vector.broadcast %cst_43 : f32 to vector<1x128xf32>
    %94 = arith.addf %92, %93 : vector<1x128xf32>
    %cst_44 = arith.constant 5.000000e-01 : f32
    %95 = vector.broadcast %cst_44 : f32 to vector<1x128xf32>
    %96 = arith.mulf %95, %94 : vector<1x128xf32>
    %c0_45 = arith.constant 0 : index
    %c0_46 = arith.constant 0 : index
    %c0_47 = arith.constant 0 : index
    %97 = vector.load %arg6[%c0_45, %c0_46, %c0_47] : memref<1x1x128xf32, #tpu.memory_space<vmem>>, vector<1x1x128xf32>
    %98 = vector.shape_cast %97 : vector<1x1x128xf32> to vector<1x128xf32>
    %99 = vector.shape_cast %96 : vector<1x128xf32> to vector<1x1x128xf32>
    tpu.vector_store %arg6[%c0_45, %c0_46, %c0_47], %99 {strides = array<i32>} : memref<1x1x128xf32, #tpu.memory_space<vmem>>, vector<1x1x128xf32>,
    return
  }
  func.func @transform_0(%arg0: i32) -> (i32, i32, i32) {
    %c0_i32 = arith.constant 0 : i32
    %c0_i32_0 = arith.constant 0 : i32
    %c0_i32_1 = arith.constant 0 : i32
    return %c0_i32, %arg0, %c0_i32_0 : i32, i32, i32
  }
  func.func @transform_1(%arg0: i32) -> (i32, i32) {
    %c0_i32 = arith.constant 0 : i32
    %c0_i32_0 = arith.constant 0 : i32
    %c0_i32_1 = arith.constant 0 : i32
    return %c0_i32, %c0_i32_0 : i32, i32
  }
  func.func @transform_2(%arg0: i32) -> i32 {
    %c0_i32 = arith.constant 0 : i32
    %c0_i32_0 = arith.constant 0 : i32
    return %c0_i32 : i32
  }
  func.func @transform_3(%arg0: i32) -> (i32, i32) {
    %c0_i32 = arith.constant 0 : i32
    %c0_i32_0 = arith.constant 0 : i32
    %c0_i32_1 = arith.constant 0 : i32
    return %c0_i32, %c0_i32_0 : i32, i32
  }
  func.func @transform_4(%arg0: i32) -> i32 {
    %c0_i32 = arith.constant 0 : i32
    %c0_i32_0 = arith.constant 0 : i32
    return %c0_i32 : i32
  }
  func.func @transform_5(%arg0: i32) -> (i32, i32, i32) {
    %c0_i32 = arith.constant 0 : i32
    %c0_i32_0 = arith.constant 0 : i32
    %c0_i32_1 = arith.constant 0 : i32
    return %c0_i32, %arg0, %c0_i32_0 : i32, i32, i32
  }
}

</mosaic_0001>

<llo_original>
// kernel: tpu_custom_call.1
$region0: #{tpu_custom_call.1}
  #allocation0 [shape = 'u32[]', space=smem, size = 0x4, offset = 0x4, fixed_abs, tag = 'smem constant byte address 0x4 - core index']
  #allocation1 [shape = 'u32[72,128]{1,0:T(1,128)}', space=vmem, size = 0x9000, scoped, tag = 'internal scratch']
  #allocation2 [shape = 'f32[1]{0:T(128)S(6)}', space=smem, size = 0x200, scoped, tag = 'scoped memory for tpu_custom_call.1']
  %s0 = inlined_call_operand.vmem [shape: f32[2,1,128], index: 0, kind: input, shape index: {}]
  %s1 = inlined_call_operand.vmem [shape: f32[4,2], index: 1, kind: input, shape index: {}]
  %s2 = inlined_call_operand.vmem [shape: f32[4], index: 2, kind: input, shape index: {}]
  %s3 = inlined_call_operand.vmem [shape: f32[1,4], index: 3, kind: input, shape index: {}]
  %s4 = inlined_call_operand.<no memory space> [shape: f32[1], index: 4, kind: input, shape index: {}]
  %s5 = inlined_call_operand.hbm [shape: f32[1,1,128], index: 5, kind: output, shape index: {}]
  %s6 = sld [smem:[#allocation0]]
  $region42: #{tpu_custom_call.1} parent=0
    _
  %s8 = ssub.s32 1, %s6
  %s9 = scalar_select 0, %s8, %s6
  %10 = sst [smem:[#allocation2]] %s4
  $region1: #{tpu_custom_call.1} parent=0
    #allocation3 [shape = 'u8[2048]{0}', space=smem, size = 0x800, scoped, tag = 'input window, operand 1, single buffered']
    #allocation4 [shape = 's32[1]{0}', space=sflag, size = 0x4, scoped, tag = 'scoped memory for tpu_custom_call.1']
    #allocation5 [shape = 's32[1]{0}', space=sflag, size = 0x4, scoped, tag = 'scoped memory for tpu_custom_call.1']
    #allocation6 [shape = 'u8[512]{0}', space=smem, size = 0x200, scoped, tag = 'input window, operand 2, single buffered']
    #allocation7 [shape = 's32[1]{0}', space=sflag, size = 0x4, scoped, tag = 'scoped memory for tpu_custom_call.1']
    #allocation8 [shape = 'u8[512]{0}', space=smem, size = 0x200, scoped, tag = 'input window, operand 3, single buffered']
    #allocation9 [shape = 'u8[512]{0}', space=vmem, size = 0x400, scoped, tag = 'output window, operand 0, single buffered']
    %11 = vsyncpa [#allocation5], 0
    %12 = vsyncpa [#allocation7], 0
    %13 = vsyncpa [#allocation4], 0
    // Predicated region
    $region2: #{tpu_custom_call.1} parent=1 // pred_check
      _
    $region3: #{tpu_custom_call.1} parent=1 // pred_check_branch
      %15 = sbr.rel (0) target = $region5
    $region4: #{tpu_custom_call.1} parent=1 // pred_region
      _
    $region5: #{tpu_custom_call.1} parent=1 // pred_fallthru
      _
    // Predicated region
    $region6: #{tpu_custom_call.1} parent=1 // pred_check
      _
    $region7: #{tpu_custom_call.1} parent=1 // pred_check_branch
      %17 = sbr.rel (0) target = $region9
    $region8: #{tpu_custom_call.1} parent=1 // pred_region
      %19 = vsyncadd [#allocation5], 0
      %s21 = sshll.u32 %s1, 4
      %s22 = int_to_ptr.vmem [resolvable:$true] %s21
      %24 = dma.vmem_to_smem %s22, 64, [#allocation3], [#allocation5]
    $region9: #{tpu_custom_call.1} parent=1 // pred_fallthru
      _
    // Predicated region
    $region10: #{tpu_custom_call.1} parent=1 // pred_check
      _
    $region11: #{tpu_custom_call.1} parent=1 // pred_check_branch
      %26 = sbr.rel (0) target = $region13
    $region12: #{tpu_custom_call.1} parent=1 // pred_region
      %28 = vsyncadd [#allocation7], 0
      %s30 = sshll.u32 %s2, 4
      %s31 = int_to_ptr.vmem [resolvable:$true] %s30
      %33 = dma.vmem_to_smem %s31, 16, [#allocation6], [#allocation7]
    $region13: #{tpu_custom_call.1} parent=1 // pred_fallthru
      _
    // Predicated region
    $region14: #{tpu_custom_call.1} parent=1 // pred_check
      _
    $region15: #{tpu_custom_call.1} parent=1 // pred_check_branch
      %35 = sbr.rel (0) target = $region17
    $region16: #{tpu_custom_call.1} parent=1 // pred_region
      %37 = vsyncadd [#allocation7], 0
      %s39 = sshll.u32 %s3, 4
      %s40 = int_to_ptr.vmem [resolvable:$true] %s39
      %42 = dma.vmem_to_smem %s40, 16, [#allocation8], [#allocation7]
    $region17: #{tpu_custom_call.1} parent=1 // pred_fallthru
      _
    // Predicated region
    $region18: #{tpu_custom_call.1} parent=1 // pred_check
      _
    $region19: #{tpu_custom_call.1} parent=1 // pred_check_branch
      %44 = sbr.rel (0) target = $region21
    $region20: #{tpu_custom_call.1} parent=1 // pred_region
      _
    $region21: #{tpu_custom_call.1} parent=1 // pred_fallthru
      _
    // Predicated region
    $region22: #{tpu_custom_call.1} parent=1 // pred_check
      _
    $region23: #{tpu_custom_call.1} parent=1 // pred_check_branch
      %46 = sbr.rel (0) target = $region25
    $region24: #{tpu_custom_call.1} parent=1 // pred_region
      %48 = dma.done [#allocation5], 64
    $region25: #{tpu_custom_call.1} parent=1 // pred_fallthru
      _
    // Predicated region
    $region26: #{tpu_custom_call.1} parent=1 // pred_check
      _
    $region27: #{tpu_custom_call.1} parent=1 // pred_check_branch
      %50 = sbr.rel (0) target = $region29
    $region28: #{tpu_custom_call.1} parent=1 // pred_region
      %52 = dma.done [#allocation7], 16
    $region29: #{tpu_custom_call.1} parent=1 // pred_fallthru
      _
    // Predicated region
    $region30: #{tpu_custom_call.1} parent=1 // pred_check
      _
    $region31: #{tpu_custom_call.1} parent=1 // pred_check_branch
      %54 = sbr.rel (0) target = $region33
    $region32: #{tpu_custom_call.1} parent=1 // pred_region
      %56 = dma.done [#allocation7], 16
    $region33: #{tpu_custom_call.1} parent=1 // pred_fallthru
      _
    %57 = sfence
    %v58 = vld [vmem:[%s0] sm:$0x1]
    %s59 = scalar_lea.vmem %s0, 1
    %v60 = vld [vmem:[%s59] sm:$0x1]
    %s61 = sld [smem:[#allocation3]]
    %v62 = vstv %s61
    %v63 = vmul.f32 %v58, %v62
    %s64 = sld [smem:[#allocation3 + $0x1]]
    %v65 = vstv %s64
    %v66 = vmul.f32 %v60, %v65
    %v67 = vadd.f32 %v63, %v66
    %s68 = sld [smem:[#allocation6]]
    %v69 = vstv %s68
    %v70 = vadd.f32 %v67, %v69
    %v71 = vmul.f32 %v70, 0.5
    %v72 = vtanh.pop %v71
    %v73 = vadd.f32 %v72, 1.0
    %v74 = vmul.f32 %v73, 0.5
    %s75 = sld [smem:[#allocation3 + $0x80]]
    %v76 = vstv %s75
    %v77 = vmul.f32 %v58, %v76
    %s78 = sld [smem:[#allocation3 + $0x81]]
    %v79 = vstv %s78
    %v80 = vmul.f32 %v60, %v79
    %v81 = vadd.f32 %v77, %v80
    %s82 = sld [smem:[#allocation6 + $0x1]]
    %v83 = vstv %s82
    %v84 = vadd.f32 %v81, %v83
    %v85 = vmul.f32 %v84, 0.5
    %v86 = vtanh.pop %v85
    %v87 = vadd.f32 %v86, 1.0
    %v88 = vmul.f32 %v87, 0.5
    %s89 = sld [smem:[#allocation3 + $0x100]]
    %v90 = vstv %s89
    %v91 = vmul.f32 %v58, %v90
    %s92 = sld [smem:[#allocation3 + $0x101]]
    %v93 = vstv %s92
    %v94 = vmul.f32 %v60, %v93
    %v95 = vadd.f32 %v91, %v94
    %s96 = sld [smem:[#allocation6 + $0x2]]
    %v97 = vstv %s96
    %v98 = vadd.f32 %v95, %v97
    %v99 = vmul.f32 %v98, 0.5
    %v100 = vtanh.pop %v99
    %v101 = vadd.f32 %v100, 1.0
    %v102 = vmul.f32 %v101, 0.5
    %s103 = sld [smem:[#allocation3 + $0x180]]
    %v104 = vstv %s103
    %v105 = vmul.f32 %v58, %v104
    %s106 = sld [smem:[#allocation3 + $0x181]]
    %v107 = vstv %s106
    %v108 = vmul.f32 %v60, %v107
    %v109 = vadd.f32 %v105, %v108
    %s110 = sld [smem:[#allocation6 + $0x3]]
    %v111 = vstv %s110
    %v112 = vadd.f32 %v109, %v111
    %v113 = vmul.f32 %v112, 0.5
    %v114 = vtanh.pop %v113
    %v115 = vadd.f32 %v114, 1.0
    %v116 = vmul.f32 %v115, 0.5
    %s117 = sld [smem:[#allocation8]]
    %v118 = vstv %s117
    %v119 = vmul.f32 %v74, %v118
    %s120 = sld [smem:[#allocation8 + $0x1]]
    %v121 = vstv %s120
    %v122 = vmul.f32 %v88, %v121
    %v123 = vadd.f32 %v119, %v122
    %s124 = sld [smem:[#allocation8 + $0x2]]
    %v125 = vstv %s124
    %v126 = vmul.f32 %v102, %v125
    %v127 = vadd.f32 %v123, %v126
    %s128 = sld [smem:[#allocation8 + $0x3]]
    %v129 = vstv %s128
    %v130 = vmul.f32 %v116, %v129
    %v131 = vadd.f32 %v127, %v130
    %s132 = sld [smem:[#allocation2]]
    %v133 = vstv %s132
    %v134 = vadd.f32 %v131, %v133
    %v135 = vmul.f32 %v134, 0.5
    %v136 = vtanh.pop %v135
    %v137 = vadd.f32 %v136, 1.0
    %v138 = vmul.f32 %v137, 0.5
    %139 = vst [vmem:[#allocation9] sm:$0x1] %v138
    // Predicated region
    $region34: #{tpu_custom_call.1} parent=1 // pred_check
      _
    $region35: #{tpu_custom_call.1} parent=1 // pred_check_branch
      %141 = sbr.rel (0) target = $region37
    $region36: #{tpu_custom_call.1} parent=1 // pred_region
      %143 = vsyncadd [#allocation4], 0
      %s145 = sshll.u32 [#allocation9], 4
      %s146 = int_to_ptr.vmem [resolvable:$true] %s145
      %s147 = sshll.u32 %s5, 4
      %s148 = int_to_ptr.hbm [resolvable:$true] %s147
      %150 = dma.vmem_to_hbm [thread:$0]  %s146, 16, %s148, [#allocation4]
    $region37: #{tpu_custom_call.1} parent=1 // pred_fallthru
      _
    // Predicated region
    $region38: #{tpu_custom_call.1} parent=1 // pred_check
      _
    $region39: #{tpu_custom_call.1} parent=1 // pred_check_branch
      %152 = sbr.rel (0) target = $region41
    $region40: #{tpu_custom_call.1} parent=1 // pred_region
      %154 = dma.done [#allocation4], 16
    $region41: #{tpu_custom_call.1} parent=1 // pred_fallthru
      _
    %155 = vsyncpa [#allocation4], 1
    %156 = vsyncpa [#allocation5], 1
    %157 = vsyncpa [#allocation7], 1

</llo_original>
